<compile_context>
chip_gen: v5e
topology: v5e:2x2
jax: 0.10.0
libtpu: 0.0.40
codegen_flags: <defaults>
</compile_context>

<pallas_src>
import jax
import jax.numpy as jnp
from jax.experimental import pallas as pl
from jax.experimental.pallas import tpu as pltpu


def _round_up(x, m):
    return (x + m - 1) // m * m


# ----------------------------------------------------------------------------- kernel
def _fused_mlp_kernel(u_ref, m_ref, p_ref, b1_ref, w2_ref, b2_ref, wo_ref,
                      bo_ref, o_ref):
    k_pad = p_ref.shape[1]
    tb = u_ref.shape[1]

    # Fused embedding-gather + Linear(64,64): build a "two-hot" selection
    # matrix (column b has a 1 at row users[b] and a 1 at the offset movie row)
    # and contract it against the pre-projected table P on the MXU.
    row = jax.lax.broadcasted_iota(jnp.int32, (k_pad, tb), 0)
    hot = (row == u_ref[...]) | (row == m_ref[...])          # [K, TB] bool
    sel = jnp.where(hot, 1.0, 0.0).astype(jnp.bfloat16)      # [K, TB] bf16

    # Layer 1 (gather + Linear fused) + ReLU.  Dropout is eval-mode identity;
    # BN1 is folded into layer 2.  bf16 cast fused with the ReLU (v5e vst slot).
    h = jnp.dot(p_ref[...], sel, preferred_element_type=jnp.float32) + b1_ref[...]
    h = jnp.maximum(h, 0.0).astype(jnp.bfloat16)              # [64, TB]

    # Layer 2 (BN1 folded in) + ReLU (BN2 folded into the head).
    h = jnp.dot(w2_ref[...], h, preferred_element_type=jnp.float32) + b2_ref[...]
    h = jnp.maximum(h, 0.0).astype(jnp.bfloat16)              # [64, TB]

    # Head Linear(64,1), zero-padded to 8 MXU rows; store only row 0 into the
    # lane-dense (1, TB) output block.
    out = jnp.dot(wo_ref[...], h, preferred_element_type=jnp.float32) + bo_ref[...]
    o_ref[...] = out[0:1, :]


def recsys_forward_pallas(u2d, m2d, kp, tile_b):
    """u2d/m2d: [1, b_pad] int32 (movie indices already row-offset). -> [1, b_pad] f32."""
    b_pad = u2d.shape[1]
    grid = (b_pad // tile_b,)

    idx_spec = pl.BlockSpec((1, tile_b), lambda i: (0, i))

    def resident(arr):  # tiny parameter, same block every step -> stays in VMEM
        return pl.BlockSpec(arr.shape, lambda i: (0, 0))

    return pl.pallas_call(
        _fused_mlp_kernel,
        out_shape=jax.ShapeDtypeStruct((1, b_pad), jnp.float32),
        grid=grid,
        in_specs=[idx_spec, idx_spec,
                  resident(kp["p_t"]), resident(kp["b1_t"]),
                  resident(kp["w2_t"]), resident(kp["b2_t"]),
                  resident(kp["wo_t"]), resident(kp["bo"])],
        out_specs=pl.BlockSpec((1, tile_b), lambda i: (0, i)),
        compiler_params=pltpu.CompilerParams(
            dimension_semantics=("parallel",),
            vmem_limit_bytes=32 * 1024 * 1024),
    )(u2d, m2d, kp["p_t"], kp["b1_t"], kp["w2_t"], kp["b2_t"], kp["wo_t"], kp["bo"])


# ----------------------------------------------------------------------------- params
def init_params(key, n_users, n_movies, emb_dim=32, hidden=64):
    """PyTorch-style parameters (f32) + non-trivial BN running state (eval mode)."""
    ks = jax.random.split(key, 7)
    user_embed = jax.random.normal(ks[0], (n_users, emb_dim), jnp.float32)
    movie_embed = jax.random.normal(ks[1], (n_movies, emb_dim), jnp.float32)

    def linear(k, fan_in, fan_out):
        kw, kb = jax.random.split(k)
        bound = 1.0 / jnp.sqrt(fan_in)
        w = jax.random.uniform(kw, (fan_in, fan_out), jnp.float32, -bound, bound)
        b = jax.random.uniform(kb, (fan_out,), jnp.float32, -bound, bound)
        return w, b

    w1, b1 = linear(ks[2], 2 * emb_dim, hidden)
    w2, b2 = linear(ks[3], hidden, hidden)
    wo, bo = linear(ks[4], hidden, 1)

    def bn_state(k):
        kg, kb_, km_, kv = jax.random.split(k, 4)
        return (jax.random.uniform(kg, (hidden,), jnp.float32, 0.5, 1.5),
                0.1 * jax.random.normal(kb_, (hidden,), jnp.float32),
                0.1 * jax.random.normal(km_, (hidden,), jnp.float32),
                jax.random.uniform(kv, (hidden,), jnp.float32, 0.5, 1.5))

    g1, be1, mu1, v1 = bn_state(ks[5])
    g2, be2, mu2, v2 = bn_state(ks[6])
    return {
        "user_embed": user_embed, "movie_embed": movie_embed,
        "w1": w1, "b1": b1, "w2": w2, "b2": b2, "wo": wo, "bo": bo,
        "bn1_gamma": g1, "bn1_beta": be1, "bn1_mean": mu1, "bn1_var": v1,
        "bn2_gamma": g2, "bn2_beta": be2, "bn2_mean": mu2, "bn2_var": v2,
    }


def prepare_kernel_params(params, eps=1e-5, k_align=64):
    """Fold eval-mode BN into the next Linear (exact), pre-project the embedding
    tables through the layer-1 weights (exact), transpose to feature-major and
    cast MXU operands to bf16."""
    user_embed, movie_embed = params["user_embed"], params["movie_embed"]
    n_users, emb_dim = user_embed.shape
    n_movies = movie_embed.shape[0]
    w1, b1 = params["w1"], params["b1"]
    hidden = w1.shape[1]

    def bn_fold(pfx):
        scale = params[pfx + "_gamma"] / jnp.sqrt(params[pfx + "_var"] + eps)
        shift = params[pfx + "_beta"] - params[pfx + "_mean"] * scale
        return scale, shift

    s1, sh1 = bn_fold("bn1")
    s2, sh2 = bn_fold("bn2")
    # bn1(h) @ W2 + b2 == h @ (s1[:,None]*W2) + (b2 + sh1 @ W2)   (exact)
    w2 = params["w2"] * s1[:, None]
    b2 = params["b2"] + sh1 @ params["w2"]
    # bn2(h) @ Wo + bo == h @ (s2[:,None]*Wo) + (bo + sh2 @ Wo)   (exact)
    wo = params["wo"] * s2[:, None]                      # [64, 1]
    bo = params["bo"] + sh2 @ params["wo"]               # [1]

    # Exact fusion of gather + Linear1:
    #   W1ᵀ·concat(Eu[u], Em[m]) == (Eu@W1[:32]).T[:,u] + (Em@W1[32:]).T[:,m]
    pu = (user_embed @ w1[:emb_dim, :]).T                # [64, n_users]  f32
    pm = (movie_embed @ w1[emb_dim:, :]).T               # [64, n_movies] f32
    ku = _round_up(n_users, k_align)
    km = _round_up(n_movies, k_align)
    p_t = jnp.zeros((hidden, ku + km), jnp.float32)
    p_t = p_t.at[:, :n_users].set(pu).at[:, ku:ku + n_movies].set(pm)

    # Zero-pad the single head row to 8 rows -> native (8,*) MXU tile.
    wo8 = jnp.zeros((8, hidden), jnp.float32).at[0].set(wo[:, 0])

    bf16 = jnp.bfloat16
    return {
        "p_t": p_t.astype(bf16),                          # [64, Ku+Km]
        "b1_t": b1.reshape(-1, 1).astype(jnp.float32),    # [64, 1]
        "w2_t": w2.T.astype(bf16),                        # [64, 64]
        "b2_t": b2.reshape(-1, 1).astype(jnp.float32),    # [64, 1]
        "wo_t": wo8.astype(bf16),                         # [8, 64]
        "bo": bo.reshape(1, 1).astype(jnp.float32),       # [1, 1]
        "movie_row_offset": ku,                           # python int
    }


# ----------------------------------------------------------------------------- wrapper
def recsys_model(users, movies, kp, tile_b_max=4096):
    """users/movies: int [B]. Returns [B, 1] f32 predictions (eval mode)."""
    B = users.shape[0]
    b_ceil = _round_up(B, 128)
    tile_b = min(tile_b_max, b_ceil)
    # Keep the batch grid >= 2 steps when possible so the "parallel" axis can
    # shard across both TensorCores on v7x.
    if b_ceil // tile_b < 2 and b_ceil >= 256:
        tile_b = _round_up(b_ceil // 2, 128)
    b_pad = _round_up(B, tile_b)

    # Pad the cheap int32 index vectors (4 B/elem), never gathered activations.
    u = users.astype(jnp.int32)
    m = movies.astype(jnp.int32)
    if b_pad != B:
        u = jnp.pad(u, (0, b_pad - B))
        m = jnp.pad(m, (0, b_pad - B))
    u = u.reshape(1, b_pad)
    m = (m + kp["movie_row_offset"]).reshape(1, b_pad)

    out = recsys_forward_pallas(u, m, kp, tile_b)         # [1, b_pad] f32
    return out[0, :B].reshape(B, 1)                       # [B, 1]


def reference_forward(users, movies, p, eps=1e-5):
    """Pure-JAX f32 reference matching the PyTorch module (eval mode)."""
    x = jnp.concatenate([p["user_embed"][users], p["movie_embed"][movies]], axis=1)
    h = jnp.maximum(x @ p["w1"] + p["b1"], 0.0)
    h = (h - p["bn1_mean"]) * (p["bn1_gamma"] / jnp.sqrt(p["bn1_var"] + eps)) + p["bn1_beta"]
    h = jnp.maximum(h @ p["w2"] + p["b2"], 0.0)
    h = (h - p["bn2_mean"]) * (p["bn2_gamma"] / jnp.sqrt(p["bn2_var"] + eps)) + p["bn2_beta"]
    return h @ p["wo"] + p["bo"]


if __name__ == "__main__":
    key = jax.random.PRNGKey(0)
    kparam_key, ku_key, km_key = jax.random.split(key, 3)

    n_users, n_movies, batch = 50, 40, 8
    params = init_params(kparam_key, n_users, n_movies)
    kparams = prepare_kernel_params(params)

    users = jax.random.randint(ku_key, (batch,), 0, n_users, dtype=jnp.int32)
    movies = jax.random.randint(km_key, (batch,), 0, n_movies, dtype=jnp.int32)

    out = recsys_model(users, movies, kparams)
    out = jax.block_until_ready(out)

    assert out.shape == (batch, 1) and out.dtype == jnp.float32
    ref = reference_forward(users, movies, params)
    # bf16 weights/tables vs f32 reference -> loose tolerance.
    max_err = float(jnp.max(jnp.abs(out - ref)))
    assert max_err < 5e-2, f"max abs error vs reference: {max_err}"
    print("KERNEL_OK")
</pallas_src>

<mosaic_0001>
module attributes {stable_mosaic.version = 11 : i64} {
  func.func @_fused_mlp_kernel(%arg0: i32, %arg1: memref<1x128xi32, #tpu.memory_space<vmem>>, %arg2: memref<1x128xi32, #tpu.memory_space<vmem>>, %arg3: memref<64x128xbf16, #tpu.memory_space<vmem>>, %arg4: memref<64x1xf32, #tpu.memory_space<vmem>>, %arg5: memref<64x64xbf16, #tpu.memory_space<vmem>>, %arg6: memref<64x1xf32, #tpu.memory_space<vmem>>, %arg7: memref<8x64xbf16, #tpu.memory_space<vmem>>, %arg8: memref<1x1xf32, #tpu.memory_space<vmem>>, %arg9: memref<1x128xf32, #tpu.memory_space<vmem>>) attributes {dimension_semantics = [#tpu.dimension_semantics<parallel>], iteration_bounds = array<i64: 1>, scalar_prefetch = 0 : i64, scratch_operands = 0 : i64, tpu.core_type = #tpu.core_type<tc>, window_params = [{transform_indices = @transform_0, window_bounds = array<i64: 1, 128>}, {transform_indices = @transform_1, window_bounds = array<i64: 1, 128>}, {pipeline_mode = #tpu.pipeline_mode<synchronous>, transform_indices = @transform_2, window_bounds = array<i64: 64, 128>}, {pipeline_mode = #tpu.pipeline_mode<synchronous>, transform_indices = @transform_3, window_bounds = array<i64: 64, 1>}, {pipeline_mode = #tpu.pipeline_mode<synchronous>, transform_indices = @transform_4, window_bounds = array<i64: 64, 64>}, {pipeline_mode = #tpu.pipeline_mode<synchronous>, transform_indices = @transform_5, window_bounds = array<i64: 64, 1>}, {pipeline_mode = #tpu.pipeline_mode<synchronous>, transform_indices = @transform_6, window_bounds = array<i64: 8, 64>}, {pipeline_mode = #tpu.pipeline_mode<synchronous>, transform_indices = @transform_7, window_bounds = array<i64: 1, 1>}, {transform_indices = @transform_8, window_bounds = array<i64: 1, 128>}]} {
    %0 = tpu.iota {dimensions = array<i32: 0>} : vector<128x128xi32>
    %c0 = arith.constant 0 : index
    %c0_0 = arith.constant 0 : index
    %1 = vector.load %arg1[%c0, %c0_0] : memref<1x128xi32, #tpu.memory_space<vmem>>, vector<1x128xi32>
    %2 = vector.broadcast %1 : vector<1x128xi32> to vector<128x128xi32>
    %3 = arith.cmpi eq, %0, %2 : vector<128x128xi32>
    %c0_1 = arith.constant 0 : index
    %c0_2 = arith.constant 0 : index
    %4 = vector.load %arg2[%c0_1, %c0_2] : memref<1x128xi32, #tpu.memory_space<vmem>>, vector<1x128xi32>
    %5 = vector.broadcast %4 : vector<1x128xi32> to vector<128x128xi32>
    %6 = arith.cmpi eq, %0, %5 : vector<128x128xi32>
    %7 = arith.ori %3, %6 : vector<128x128xi1>
    %cst = arith.constant 1.000000e+00 : f32
    %cst_3 = arith.constant 0.000000e+00 : f32
    %8 = vector.broadcast %cst : f32 to vector<128x128xf32>
    %9 = vector.broadcast %cst_3 : f32 to vector<128x128xf32>
    %10 = arith.select %7, %8, %9 : vector<128x128xi1>, vector<128x128xf32>
    %11 = arith.truncf %10 : vector<128x128xf32> to vector<128x128xbf16>
    %c0_4 = arith.constant 0 : index
    %c0_5 = arith.constant 0 : index
    %12 = vector.load %arg3[%c0_4, %c0_5] : memref<64x128xbf16, #tpu.memory_space<vmem>>, vector<64x128xbf16>
    %cst_6 = arith.constant dense<0.000000e+00> : vector<64x128xf32>
    %13 = tpu.matmul %12, %11, %cst_6 {dimension_numbers = #tpu.dot_dimension_numbers<[1], [0], [0], [1], [0, 0, 1, 1], [], []>} : vector<64x128xbf16>, vector<128x128xbf16>, vector<64x128xf32> -> vector<64x128xf32>
    %c0_7 = arith.constant 0 : index
    %c0_8 = arith.constant 0 : index
    %14 = vector.load %arg4[%c0_7, %c0_8] : memref<64x1xf32, #tpu.memory_space<vmem>>, vector<64x1xf32>
    %15 = vector.broadcast %14 : vector<64x1xf32> to vector<64x128xf32>
    %16 = arith.addf %13, %15 : vector<64x128xf32>
    %cst_9 = arith.constant 0.000000e+00 : f32
    %17 = vector.broadcast %cst_9 : f32 to vector<64x128xf32>
    %18 = arith.maximumf %16, %17 : vector<64x128xf32>
    %19 = arith.truncf %18 : vector<64x128xf32> to vector<64x128xbf16>
    %c0_10 = arith.constant 0 : index
    %c0_11 = arith.constant 0 : index
    %20 = vector.load %arg5[%c0_10, %c0_11] : memref<64x64xbf16, #tpu.memory_space<vmem>>, vector<64x64xbf16>
    %cst_12 = arith.constant dense<0.000000e+00> : vector<64x128xf32>
    %21 = tpu.matmul %20, %19, %cst_12 {dimension_numbers = #tpu.dot_dimension_numbers<[1], [0], [0], [1], [0, 0, 1, 1], [], []>} : vector<64x64xbf16>, vector<64x128xbf16>, vector<64x128xf32> -> vector<64x128xf32>
    %c0_13 = arith.constant 0 : index
    %c0_14 = arith.constant 0 : index
    %22 = vector.load %arg6[%c0_13, %c0_14] : memref<64x1xf32, #tpu.memory_space<vmem>>, vector<64x1xf32>
    %23 = vector.broadcast %22 : vector<64x1xf32> to vector<64x128xf32>
    %24 = arith.addf %21, %23 : vector<64x128xf32>
    %cst_15 = arith.constant 0.000000e+00 : f32
    %25 = vector.broadcast %cst_15 : f32 to vector<64x128xf32>
    %26 = arith.maximumf %24, %25 : vector<64x128xf32>
    %27 = arith.truncf %26 : vector<64x128xf32> to vector<64x128xbf16>
    %c0_16 = arith.constant 0 : index
    %c0_17 = arith.constant 0 : index
    %28 = vector.load %arg7[%c0_16, %c0_17] : memref<8x64xbf16, #tpu.memory_space<vmem>>, vector<8x64xbf16>
    %cst_18 = arith.constant dense<0.000000e+00> : vector<8x128xf32>
    %29 = tpu.matmul %28, %27, %cst_18 {dimension_numbers = #tpu.dot_dimension_numbers<[1], [0], [0], [1], [0, 0, 1, 1], [], []>} : vector<8x64xbf16>, vector<64x128xbf16>, vector<8x128xf32> -> vector<8x128xf32>
    %c0_19 = arith.constant 0 : index
    %c0_20 = arith.constant 0 : index
    %30 = vector.load %arg8[%c0_19, %c0_20] : memref<1x1xf32, #tpu.memory_space<vmem>>, vector<1x1xf32>
    %31 = vector.broadcast %30 : vector<1x1xf32> to vector<8x128xf32>
    %32 = arith.addf %29, %31 : vector<8x128xf32>
    %33 = vector.extract_strided_slice %32 {offsets = [0, 0], sizes = [1, 128], strides = [1, 1]} : vector<8x128xf32> to vector<1x128xf32>
    %c0_21 = arith.constant 0 : index
    %c0_22 = arith.constant 0 : index
    %34 = vector.load %arg9[%c0_21, %c0_22] : memref<1x128xf32, #tpu.memory_space<vmem>>, vector<1x128xf32>
    tpu.vector_store %arg9[%c0_21, %c0_22], %33 {strides = array<i32>} : memref<1x128xf32, #tpu.memory_space<vmem>>, vector<1x128xf32>,
    return
  }
  func.func @transform_0(%arg0: i32) -> (i32, i32) {
    %c0_i32 = arith.constant 0 : i32
    %c0_i32_0 = arith.constant 0 : i32
    return %c0_i32, %arg0 : i32, i32
  }
  func.func @transform_1(%arg0: i32) -> (i32, i32) {
    %c0_i32 = arith.constant 0 : i32
    %c0_i32_0 = arith.constant 0 : i32
    return %c0_i32, %arg0 : i32, i32
  }
  func.func @transform_2(%arg0: i32) -> (i32, i32) {
    %c0_i32 = arith.constant 0 : i32
    %c0_i32_0 = arith.constant 0 : i32
    %c0_i32_1 = arith.constant 0 : i32
    return %c0_i32, %c0_i32_0 : i32, i32
  }
  func.func @transform_3(%arg0: i32) -> (i32, i32) {
    %c0_i32 = arith.constant 0 : i32
    %c0_i32_0 = arith.constant 0 : i32
    %c0_i32_1 = arith.constant 0 : i32
    return %c0_i32, %c0_i32_0 : i32, i32
  }
  func.func @transform_4(%arg0: i32) -> (i32, i32) {
    %c0_i32 = arith.constant 0 : i32
    %c0_i32_0 = arith.constant 0 : i32
    %c0_i32_1 = arith.constant 0 : i32
    return %c0_i32, %c0_i32_0 : i32, i32
  }
  func.func @transform_5(%arg0: i32) -> (i32, i32) {
    %c0_i32 = arith.constant 0 : i32
    %c0_i32_0 = arith.constant 0 : i32
    %c0_i32_1 = arith.constant 0 : i32
    return %c0_i32, %c0_i32_0 : i32, i32
  }
  func.func @transform_6(%arg0: i32) -> (i32, i32) {
    %c0_i32 = arith.constant 0 : i32
    %c0_i32_0 = arith.constant 0 : i32
    %c0_i32_1 = arith.constant 0 : i32
    return %c0_i32, %c0_i32_0 : i32, i32
  }
  func.func @transform_7(%arg0: i32) -> (i32, i32) {
    %c0_i32 = arith.constant 0 : i32
    %c0_i32_0 = arith.constant 0 : i32
    %c0_i32_1 = arith.constant 0 : i32
    return %c0_i32, %c0_i32_0 : i32, i32
  }
  func.func @transform_8(%arg0: i32) -> (i32, i32) {
    %c0_i32 = arith.constant 0 : i32
    %c0_i32_0 = arith.constant 0 : i32
    return %c0_i32, %arg0 : i32, i32
  }
}

</mosaic_0001>

<llo_original>
// kernel: tpu_custom_call.1
$region0: #{tpu_custom_call.1}
  #allocation0 [shape = 'u32[]', space=smem, size = 0x4, offset = 0x4, fixed_abs, tag = 'smem constant byte address 0x4 - core index']
  #allocation1 [shape = 'u32[72,128]{1,0:T(1,128)}', space=vmem, size = 0x9000, scoped, tag = 'internal scratch']
  #allocation2 [shape = 'f32[1,1]{1,0:T(1,128)S(1)}', space=vmem, size = 0x200, scoped, tag = 'scoped memory for tpu_custom_call.1']
  %s0 = inlined_call_operand.vmem [shape: s32[1,128], index: 0, kind: input, shape index: {}]
  %s1 = inlined_call_operand.vmem [shape: s32[1,128], index: 1, kind: input, shape index: {}]
  %s2 = inlined_call_operand.vmem [shape: bf16[64,128], index: 2, kind: input, shape index: {}]
  %s3 = inlined_call_operand.vmem [shape: f32[64,1], index: 3, kind: input, shape index: {}]
  %s4 = inlined_call_operand.vmem [shape: bf16[64,64], index: 4, kind: input, shape index: {}]
  %s5 = inlined_call_operand.vmem [shape: f32[64,1], index: 5, kind: input, shape index: {}]
  %s6 = inlined_call_operand.vmem [shape: bf16[8,64], index: 6, kind: input, shape index: {}]
  %s7 = inlined_call_operand.<no memory space> [shape: f32[1,1], index: 7, kind: input, shape index: {}]
  %s8 = inlined_call_operand.hbm [shape: f32[1,128], index: 8, kind: output, shape index: {}]
  %s9 = sld [smem:[#allocation0]]
  $region42: #{tpu_custom_call.1} parent=0
    _
  %s11 = ssub.s32 1, %s9
  %s12 = scalar_select 0, %s11, %s9
  %v13 = vstv %s7
  %14 = vst [vmem:[#allocation2] sm:$0x1] %v13
  $region1: #{tpu_custom_call.1} parent=0
    #allocation3 [shape = 'u8[512]{0}', space=vmem, size = 0x400, scoped, tag = 'output window, operand 0, single buffered']
    #allocation4 [shape = 's32[1]{0}', space=sflag, size = 0x4, scoped, tag = 'scoped memory for tpu_custom_call.1']
    %15 = vsyncpa [#allocation4], 0
    // Predicated region
    $region2: #{tpu_custom_call.1} parent=1 // pred_check
      _
    $region3: #{tpu_custom_call.1} parent=1 // pred_check_branch
      %17 = sbr.rel (0) target = $region5
    $region4: #{tpu_custom_call.1} parent=1 // pred_region
      _
    $region5: #{tpu_custom_call.1} parent=1 // pred_fallthru
      _
    // Predicated region
    $region6: #{tpu_custom_call.1} parent=1 // pred_check
      _
    $region7: #{tpu_custom_call.1} parent=1 // pred_check_branch
      %19 = sbr.rel (0) target = $region9
    $region8: #{tpu_custom_call.1} parent=1 // pred_region
      _
    $region9: #{tpu_custom_call.1} parent=1 // pred_fallthru
      _
    // Predicated region
    $region10: #{tpu_custom_call.1} parent=1 // pred_check
      _
    $region11: #{tpu_custom_call.1} parent=1 // pred_check_branch
      %21 = sbr.rel (0) target = $region13
    $region12: #{tpu_custom_call.1} parent=1 // pred_region
      _
    $region13: #{tpu_custom_call.1} parent=1 // pred_fallthru
      _
    // Predicated region
    $region14: #{tpu_custom_call.1} parent=1 // pred_check
      _
    $region15: #{tpu_custom_call.1} parent=1 // pred_check_branch
      %23 = sbr.rel (0) target = $region17
    $region16: #{tpu_custom_call.1} parent=1 // pred_region
      _
    $region17: #{tpu_custom_call.1} parent=1 // pred_fallthru
      _
    // Predicated region
    $region18: #{tpu_custom_call.1} parent=1 // pred_check
      _
    $region19: #{tpu_custom_call.1} parent=1 // pred_check_branch
      %25 = sbr.rel (0) target = $region21
    $region20: #{tpu_custom_call.1} parent=1 // pred_region
      _
    $region21: #{tpu_custom_call.1} parent=1 // pred_fallthru
      _
    // Predicated region
    $region22: #{tpu_custom_call.1} parent=1 // pred_check
      _
    $region23: #{tpu_custom_call.1} parent=1 // pred_check_branch
      %27 = sbr.rel (0) target = $region25
    $region24: #{tpu_custom_call.1} parent=1 // pred_region
      _
    $region25: #{tpu_custom_call.1} parent=1 // pred_fallthru
      _
    // Predicated region
    $region26: #{tpu_custom_call.1} parent=1 // pred_check
      _
    $region27: #{tpu_custom_call.1} parent=1 // pred_check_branch
      %29 = sbr.rel (0) target = $region29
    $region28: #{tpu_custom_call.1} parent=1 // pred_region
      _
    $region29: #{tpu_custom_call.1} parent=1 // pred_fallthru
      _
    // Predicated region
    $region30: #{tpu_custom_call.1} parent=1 // pred_check
      _
    $region31: #{tpu_custom_call.1} parent=1 // pred_check_branch
      %31 = sbr.rel (0) target = $region33
    $region32: #{tpu_custom_call.1} parent=1 // pred_region
      _
    $region33: #{tpu_custom_call.1} parent=1 // pred_fallthru
      _
    %v33 = vlaneseq
    %v34 = vshrl.u32 %v33, 7
    %v35 = vadd.s32 %v34, 8
    %v36 = vadd.s32 %v34, 16
    %v37 = vadd.s32 %v34, 24
    %v38 = vadd.s32 %v34, 32
    %v39 = vadd.s32 %v34, 40
    %v40 = vadd.s32 %v34, 48
    %v41 = vadd.s32 %v34, 56
    %v42 = vadd.s32 %v34, 64
    %v43 = vadd.s32 %v34, 72
    %v44 = vadd.s32 %v34, 80
    %v45 = vadd.s32 %v34, 88
    %v46 = vadd.s32 %v34, 96
    %v47 = vadd.s32 %v34, 104
    %v48 = vadd.s32 %v34, 112
    %v49 = vadd.s32 %v34, 120
    %v50 = vld [vmem:[%s0] sm:$0x1]
    %v51 = vperm.slane %v50, 0
    %vm52 = vcmp.eq.s32.totalorder %v34, %v51
    %vm53 = vcmp.eq.s32.totalorder %v35, %v51
    %vm54 = vcmp.eq.s32.totalorder %v36, %v51
    %vm55 = vcmp.eq.s32.totalorder %v37, %v51
    %vm56 = vcmp.eq.s32.totalorder %v38, %v51
    %vm57 = vcmp.eq.s32.totalorder %v39, %v51
    %vm58 = vcmp.eq.s32.totalorder %v40, %v51
    %vm59 = vcmp.eq.s32.totalorder %v41, %v51
    %vm60 = vcmp.eq.s32.totalorder %v42, %v51
    %vm61 = vcmp.eq.s32.totalorder %v43, %v51
    %vm62 = vcmp.eq.s32.totalorder %v44, %v51
    %vm63 = vcmp.eq.s32.totalorder %v45, %v51
    %vm64 = vcmp.eq.s32.totalorder %v46, %v51
    %vm65 = vcmp.eq.s32.totalorder %v47, %v51
    %vm66 = vcmp.eq.s32.totalorder %v48, %v51
    %vm67 = vcmp.eq.s32.totalorder %v49, %v51
    %v68 = vld [vmem:[%s1] sm:$0x1]
    %v69 = vperm.slane %v68, 0
    %vm70 = vcmp.eq.s32.totalorder %v34, %v69
    %vm71 = vcmp.eq.s32.totalorder %v35, %v69
    %vm72 = vcmp.eq.s32.totalorder %v36, %v69
    %vm73 = vcmp.eq.s32.totalorder %v37, %v69
    %vm74 = vcmp.eq.s32.totalorder %v38, %v69
    %vm75 = vcmp.eq.s32.totalorder %v39, %v69
    %vm76 = vcmp.eq.s32.totalorder %v40, %v69
    %vm77 = vcmp.eq.s32.totalorder %v41, %v69
    %vm78 = vcmp.eq.s32.totalorder %v42, %v69
    %vm79 = vcmp.eq.s32.totalorder %v43, %v69
    %vm80 = vcmp.eq.s32.totalorder %v44, %v69
    %vm81 = vcmp.eq.s32.totalorder %v45, %v69
    %vm82 = vcmp.eq.s32.totalorder %v46, %v69
    %vm83 = vcmp.eq.s32.totalorder %v47, %v69
    %vm84 = vcmp.eq.s32.totalorder %v48, %v69
    %vm85 = vcmp.eq.s32.totalorder %v49, %v69
    %vm86 = vmor %vm52, %vm70
    %vm87 = vmor %vm53, %vm71
    %vm88 = vmor %vm54, %vm72
    %vm89 = vmor %vm55, %vm73
    %vm90 = vmor %vm56, %vm74
    %vm91 = vmor %vm57, %vm75
    %vm92 = vmor %vm58, %vm76
    %vm93 = vmor %vm59, %vm77
    %vm94 = vmor %vm60, %vm78
    %vm95 = vmor %vm61, %vm79
    %vm96 = vmor %vm62, %vm80
    %vm97 = vmor %vm63, %vm81
    %vm98 = vmor %vm64, %vm82
    %vm99 = vmor %vm65, %vm83
    %vm100 = vmor %vm66, %vm84
    %vm101 = vmor %vm67, %vm85
    %v102 = vsel %vm86, 1.0, 0.0
    %v103 = vsel %vm87, 1.0, 0.0
    %v104 = vsel %vm88, 1.0, 0.0
    %v105 = vsel %vm89, 1.0, 0.0
    %v106 = vsel %vm90, 1.0, 0.0
    %v107 = vsel %vm91, 1.0, 0.0
    %v108 = vsel %vm92, 1.0, 0.0
    %v109 = vsel %vm93, 1.0, 0.0
    %v110 = vsel %vm94, 1.0, 0.0
    %v111 = vsel %vm95, 1.0, 0.0
    %v112 = vsel %vm96, 1.0, 0.0
    %v113 = vsel %vm97, 1.0, 0.0
    %v114 = vsel %vm98, 1.0, 0.0
    %v115 = vsel %vm99, 1.0, 0.0
    %v116 = vsel %vm100, 1.0, 0.0
    %v117 = vsel %vm101, 1.0, 0.0
    %v118 = vpack.c.bf16 %v103, %v102
    %v119 = vpack.c.bf16 %v105, %v104
    %v120 = vpack.c.bf16 %v107, %v106
    %v121 = vpack.c.bf16 %v109, %v108
    %v122 = vpack.c.bf16 %v111, %v110
    %v123 = vpack.c.bf16 %v113, %v112
    %v124 = vpack.c.bf16 %v115, %v114
    %v125 = vpack.c.bf16 %v117, %v116
    %v126 = vld [vmem:[%s2] sm:$0xf]
    %v127 = vld [vmem:[%s2 + $0x4] sm:$0xf]
    %v128 = vld [vmem:[%s2 + $0x8] sm:$0xf]
    %v129 = vld [vmem:[%s2 + $0xc] sm:$0xf]
    %v130 = vld [vmem:[%s2 + $0x10] sm:$0xf]
    %v131 = vld [vmem:[%s2 + $0x14] sm:$0xf]
    %v132 = vld [vmem:[%s2 + $0x18] sm:$0xf]
    %v133 = vld [vmem:[%s2 + $0x1c] sm:$0xf]
    %v134 = vld [vmem:[%s3] sm:$0xff]
    %v135 = vld [vmem:[%s3 + $0x8] sm:$0xff]
    %v136 = vld [vmem:[%s3 + $0x10] sm:$0xff]
    %v137 = vld [vmem:[%s3 + $0x18] sm:$0xff]
    %v138 = vld [vmem:[%s3 + $0x20] sm:$0xff]
    %v139 = vld [vmem:[%s3 + $0x28] sm:$0xff]
    %v140 = vld [vmem:[%s3 + $0x30] sm:$0xff]
    %v141 = vld [vmem:[%s3 + $0x38] sm:$0xff]
    %143 = vset.pattern.permute.xlu0 0
    %144 = vperm.xlu0 %143, %v134
    %v145 = vpop.permute.xlu0 %144
    %148 = vset.pattern.permute.xlu0 0
    %149 = vperm.xlu0 %148, %v135
    %v150 = vpop.permute.xlu0 %149
    %153 = vset.pattern.permute.xlu0 0
    %154 = vperm.xlu0 %153, %v136
    %v155 = vpop.permute.xlu0 %154
    %158 = vset.pattern.permute.xlu0 0
    %159 = vperm.xlu0 %158, %v137
    %v160 = vpop.permute.xlu0 %159
    %163 = vset.pattern.permute.xlu0 0
    %164 = vperm.xlu0 %163, %v138
    %v165 = vpop.permute.xlu0 %164
    %168 = vset.pattern.permute.xlu0 0
    %169 = vperm.xlu0 %168, %v139
    %v170 = vpop.permute.xlu0 %169
    %173 = vset.pattern.permute.xlu0 0
    %174 = vperm.xlu0 %173, %v140
    %v175 = vpop.permute.xlu0 %174
    %178 = vset.pattern.permute.xlu0 0
    %179 = vperm.xlu0 %178, %v141
    %v180 = vpop.permute.xlu0 %179
    %v190 = vunpack.c.l.b16 %v126
    %v191 = vunpack.c.l.b16 %v127
    %v192 = vunpack.c.l.b16 %v128
    %v193 = vunpack.c.l.b16 %v129
    %v194 = vunpack.c.l.b16 %v130
    %v195 = vunpack.c.l.b16 %v131
    %v196 = vunpack.c.l.b16 %v132
    %v197 = vunpack.c.l.b16 %v133
    %v198 = vpack.c.b16 %v191, %v190
    %v199 = vpack.c.b16 %v193, %v192
    %v200 = vpack.c.b16 %v195, %v194
    %v201 = vpack.c.b16 %v197, %v196
    %206 = vmatpush.bf16.msra.mxu0 %v125
    %207 = vmatpush.bf16.msra.mxu0 %v124
    %208 = vmatpush.bf16.msra.mxu0 %v123
    %209 = vmatpush.bf16.msra.mxu0 %v122
    %210 = vmatpush.bf16.msra.mxu0 %v121
    %211 = vmatpush.bf16.msra.mxu0 %v120
    %212 = vmatpush.bf16.msra.mxu0 %v119
    %213 = vmatpush.bf16.msra.mxu0 %v118
    %214 = vmatmul.bf16.gmra.mxu0 %v198
    %v215 = vpop.f32.mrf.mxu0
    %v216 = vadd.f32 %v145, %v215
    %v217 = vpop.f32.mrf.mxu0
    %v218 = vadd.f32 %v150, %v217
    %219 = vmatmul.bf16.gmra.mxu0 %v199
    %v220 = vpop.f32.mrf.mxu0
    %v221 = vadd.f32 %v155, %v220
    %v222 = vpop.f32.mrf.mxu0
    %v223 = vadd.f32 %v160, %v222
    %224 = vmatmul.bf16.gmra.mxu0 %v200
    %v225 = vpop.f32.mrf.mxu0
    %v226 = vadd.f32 %v165, %v225
    %v227 = vpop.f32.mrf.mxu0
    %v228 = vadd.f32 %v170, %v227
    %229 = vmatmul.bf16.gmra.mxu0 %v201
    %v230 = vpop.f32.mrf.mxu0
    %v231 = vadd.f32 %v175, %v230
    %v232 = vpop.f32.mrf.mxu0
    %v233 = vadd.f32 %v180, %v232
    %234 = vdwg.mxu0
    %v235 = vmax.f32 %v216, 0.0
    %v236 = vmax.f32 %v218, 0.0
    %v237 = vmax.f32 %v221, 0.0
    %v238 = vmax.f32 %v223, 0.0
    %v239 = vmax.f32 %v226, 0.0
    %v240 = vmax.f32 %v228, 0.0
    %v241 = vmax.f32 %v231, 0.0
    %v242 = vmax.f32 %v233, 0.0
    %v243 = vpack.c.bf16 %v236, %v235
    %v244 = vpack.c.bf16 %v238, %v237
    %v245 = vpack.c.bf16 %v240, %v239
    %v246 = vpack.c.bf16 %v242, %v241
    %v247 = vld [vmem:[%s4] sm:$0xf]
    %v248 = vld [vmem:[%s4 + $0x4] sm:$0xf]
    %v249 = vld [vmem:[%s4 + $0x8] sm:$0xf]
    %v250 = vld [vmem:[%s4 + $0xc] sm:$0xf]
    %v251 = vld [vmem:[%s4 + $0x10] sm:$0xf]
    %v252 = vld [vmem:[%s4 + $0x14] sm:$0xf]
    %v253 = vld [vmem:[%s4 + $0x18] sm:$0xf]
    %v254 = vld [vmem:[%s4 + $0x1c] sm:$0xf]
    %v255 = vld [vmem:[%s5] sm:$0xff]
    %v256 = vld [vmem:[%s5 + $0x8] sm:$0xff]
    %v257 = vld [vmem:[%s5 + $0x10] sm:$0xff]
    %v258 = vld [vmem:[%s5 + $0x18] sm:$0xff]
    %v259 = vld [vmem:[%s5 + $0x20] sm:$0xff]
    %v260 = vld [vmem:[%s5 + $0x28] sm:$0xff]
    %v261 = vld [vmem:[%s5 + $0x30] sm:$0xff]
    %v262 = vld [vmem:[%s5 + $0x38] sm:$0xff]
    %264 = vset.pattern.permute.xlu0 0
    %265 = vperm.xlu0 %264, %v255
    %v266 = vpop.permute.xlu0 %265
    %269 = vset.pattern.permute.xlu0 0
    %270 = vperm.xlu0 %269, %v256
    %v271 = vpop.permute.xlu0 %270
    %274 = vset.pattern.permute.xlu0 0
    %275 = vperm.xlu0 %274, %v257
    %v276 = vpop.permute.xlu0 %275
    %279 = vset.pattern.permute.xlu0 0
    %280 = vperm.xlu0 %279, %v258
    %v281 = vpop.permute.xlu0 %280
    %284 = vset.pattern.permute.xlu0 0
    %285 = vperm.xlu0 %284, %v259
    %v286 = vpop.permute.xlu0 %285
    %289 = vset.pattern.permute.xlu0 0
    %290 = vperm.xlu0 %289, %v260
    %v291 = vpop.permute.xlu0 %290
    %294 = vset.pattern.permute.xlu0 0
    %295 = vperm.xlu0 %294, %v261
    %v296 = vpop.permute.xlu0 %295
    %299 = vset.pattern.permute.xlu0 0
    %300 = vperm.xlu0 %299, %v262
    %v301 = vpop.permute.xlu0 %300
    %v311 = vunpack.c.l.b16 %v247
    %v312 = vunpack.c.l.b16 %v248
    %v313 = vunpack.c.l.b16 %v249
    %v314 = vunpack.c.l.b16 %v250
    %v315 = vunpack.c.l.b16 %v251
    %v316 = vunpack.c.l.b16 %v252
    %v317 = vunpack.c.l.b16 %v253
    %v318 = vunpack.c.l.b16 %v254
    %v319 = vpack.c.b16 %v312, %v311
    %v320 = vpack.c.b16 %v314, %v313
    %v321 = vpack.c.b16 %v316, %v315
    %v322 = vpack.c.b16 %v318, %v317
    %vm323 = vcmask 523264
    %v325 = vsel %vm323, %v319, 0
    %v328 = vsel %vm323, %v320, 0
    %v331 = vsel %vm323, %v321, 0
    %v334 = vsel %vm323, %v322, 0
    %336 = vmatpush.bf16.msra.mxu0 0
    %337 = vmatpush.bf16.msra.mxu0 0
    %338 = vmatpush.bf16.msra.mxu0 0
    %339 = vmatpush.bf16.msra.mxu0 0
    %340 = vmatpush.bf16.msra.mxu0 %v246
    %341 = vmatpush.bf16.msra.mxu0 %v245
    %342 = vmatpush.bf16.msra.mxu0 %v244
    %343 = vmatpush.bf16.msra.mxu0 %v243
    %344 = vmatmul.bf16.gmra.mxu0 %v325
    %v345 = vpop.f32.mrf.mxu0
    %v346 = vadd.f32 %v266, %v345
    %v347 = vpop.f32.mrf.mxu0
    %v348 = vadd.f32 %v271, %v347
    %349 = vmatmul.bf16.gmra.mxu0 %v328
    %v350 = vpop.f32.mrf.mxu0
    %v351 = vadd.f32 %v276, %v350
    %v352 = vpop.f32.mrf.mxu0
    %v353 = vadd.f32 %v281, %v352
    %354 = vmatmul.bf16.gmra.mxu0 %v331
    %v355 = vpop.f32.mrf.mxu0
    %v356 = vadd.f32 %v286, %v355
    %v357 = vpop.f32.mrf.mxu0
    %v358 = vadd.f32 %v291, %v357
    %359 = vmatmul.bf16.gmra.mxu0 %v334
    %v360 = vpop.f32.mrf.mxu0
    %v361 = vadd.f32 %v296, %v360
    %v362 = vpop.f32.mrf.mxu0
    %v363 = vadd.f32 %v301, %v362
    %364 = vdwg.mxu0
    %v365 = vmax.f32 %v346, 0.0
    %v366 = vmax.f32 %v348, 0.0
    %v367 = vmax.f32 %v351, 0.0
    %v368 = vmax.f32 %v353, 0.0
    %v369 = vmax.f32 %v356, 0.0
    %v370 = vmax.f32 %v358, 0.0
    %v371 = vmax.f32 %v361, 0.0
    %v372 = vmax.f32 %v363, 0.0
    %v373 = vpack.c.bf16 %v366, %v365
    %v374 = vpack.c.bf16 %v368, %v367
    %v375 = vpack.c.bf16 %v370, %v369
    %v376 = vpack.c.bf16 %v372, %v371
    %v377 = vld [vmem:[%s6] sm:$0xf]
    %v378 = vld [vmem:[#allocation2] sm:$0x1]
    %v380 = vperm.slane %v378, 0
    %381 = vset.pattern.permute.xlu0 0
    %382 = vperm.xlu0 %381, %v380
    %v383 = vpop.permute.xlu0 %382
    %v386 = vsel %vm323, %v377, 0
    %388 = vmatpush.bf16.msra.mxu0 0
    %389 = vmatpush.bf16.msra.mxu0 0
    %390 = vmatpush.bf16.msra.mxu0 0
    %391 = vmatpush.bf16.msra.mxu0 0
    %392 = vmatpush.bf16.msra.mxu0 %v376
    %393 = vmatpush.bf16.msra.mxu0 %v375
    %394 = vmatpush.bf16.msra.mxu0 %v374
    %395 = vmatpush.bf16.msra.mxu0 %v373
    %396 = vmatmul.bf16.gmra.mxu0 %v386
    %v397 = vpop.f32.mrf.mxu0
    %v398 = vadd.f32 %v383, %v397
    %v399 = vpop.f32.mrf.mxu0
    %400 = vdwg.mxu0
    %401 = vst [vmem:[#allocation3] sm:$0x1] %v398
    // Predicated region
    $region34: #{tpu_custom_call.1} parent=1 // pred_check
      _
    $region35: #{tpu_custom_call.1} parent=1 // pred_check_branch
      %403 = sbr.rel (0) target = $region37
    $region36: #{tpu_custom_call.1} parent=1 // pred_region
      %405 = vsyncadd [#allocation4], 0
      %s407 = sshll.u32 [#allocation3], 4
      %s408 = int_to_ptr.vmem [resolvable:$true] %s407
      %s409 = sshll.u32 %s8, 4
      %s410 = int_to_ptr.hbm [resolvable:$true] %s409
      %412 = dma.vmem_to_hbm [thread:$0]  %s408, 16, %s410, [#allocation4]
    $region37: #{tpu_custom_call.1} parent=1 // pred_fallthru
      _
    // Predicated region
    $region38: #{tpu_custom_call.1} parent=1 // pred_check
      _
    $region39: #{tpu_custom_call.1} parent=1 // pred_check_branch
      %414 = sbr.rel (0) target = $region41
    $region40: #{tpu_custom_call.1} parent=1 // pred_region
      %416 = dma.done [#allocation4], 16
    $region41: #{tpu_custom_call.1} parent=1 // pred_fallthru
      _
    %417 = vsyncpa [#allocation4], 1

</llo_original>
